<compile_context>
chip_gen: v7x
topology: tpu7x:2x2x1
jax: 0.10.0
libtpu: 0.0.40
codegen_flags: <defaults>
</compile_context>

<pallas_src>
import jax
import jax.numpy as jnp
from jax.experimental import pallas as pl
from jax.experimental.pallas import tpu as pltpu

LANE = 128  # all hidden/output feature dims are zero-padded to 128 lanes


def _round_up(n, m):
    return ((n + m - 1) // m) * m


def _tensorcores_per_chip():
    """2 on v7x (dual TensorCore), 1 otherwise.  Best-effort string match."""
    try:
        kind = jax.devices()[0].device_kind.lower()
        if "v7" in kind or "7x" in kind:
            return 2
    except Exception:
        pass
    return 1


# --------------------------------------------------------------------------- #
# Kernel                                                                       #
# --------------------------------------------------------------------------- #
def mlp_kernel(x_ref, *refs):
    """Fused MLP: (Linear -> ReLU) x (L-1) -> Linear.  Dropout(p=0) = identity.

    refs = (w1, b1, w2, b2, ..., wL, bL, o_ref).  Weights are bf16, x is f32
    and cast to bf16 in-kernel; accumulation + bias-add + ReLU stay in f32.
    """
    o_ref = refs[-1]
    wb = refs[:-1]
    n_layers = len(wb) // 2

    # Layer 1: x cast to bf16 on the VPU (hidden under the MXU matmul).
    x = x_ref[...].astype(jnp.bfloat16)
    h = jnp.dot(x, wb[0][...], preferred_element_type=jnp.float32) + wb[1][...]

    # Layers 2..L: f32 ReLU, bf16 matmul input, f32 accumulate + bias.
    # (Padded lanes stay exactly zero through every layer: padded weight
    #  rows/cols and padded bias entries are zero, and relu(0) = 0.)
    for l in range(1, n_layers):
        h = jnp.maximum(h, 0.0)
        h = jnp.dot(h.astype(jnp.bfloat16), wb[2 * l][...],
                    preferred_element_type=jnp.float32) + wb[2 * l + 1][...]

    o_ref[...] = h.astype(o_ref.dtype)  # lane-dense, full-width store


# --------------------------------------------------------------------------- #
# One-time parameter preparation (hoisted out of the per-call path)            #
# --------------------------------------------------------------------------- #
def prepare_params(params, lane=LANE):
    """Pad/cast (Wt, b) params for the kernel.  Call ONCE at init.

    Layer 0's in-dim is left at its native width (x is fed unpadded and cast
    to bf16 inside the kernel); every out-dim (and each subsequent in-dim) is
    zero-padded to a multiple of 128 lanes.  Weights -> bf16, biases stay f32.
    Zero padding is exact: padded columns/rows contribute nothing and stay 0
    through ReLU.
    """
    out = []
    prev_out_p = None
    for l, (wt, b) in enumerate(params):
        d_in, d_out = wt.shape
        d_in_p = d_in if l == 0 else prev_out_p
        d_out_p = _round_up(d_out, lane)
        wt_p = jnp.pad(wt, ((0, d_in_p - d_in), (0, d_out_p - d_out)))
        b_p = jnp.pad(b, ((0, 0), (0, d_out_p - d_out)))
        out.append((wt_p.astype(jnp.bfloat16), b_p.astype(jnp.float32)))
        prev_out_p = d_out_p
    return out


# --------------------------------------------------------------------------- #
# Forward wrapper                                                              #
# --------------------------------------------------------------------------- #
def _resident_spec(shape, single_buffer):
    """BlockSpec for a weight/bias that is identical at every grid step."""
    if single_buffer:
        # Constant-index block: double-buffering it is pure VMEM waste.  Only
        # worth enabling once the weight stack is large relative to VMEM
        # (e.g. big hiddens on v7x's 64 MiB VMEM).
        return pl.BlockSpec(shape, lambda i: (0, 0), pipeline_mode=pl.Buffered(1))
    return pl.BlockSpec(shape, lambda i: (0, 0))


def mlp_forward(x, pparams, *, d_out, block_b=None, out_dtype=jnp.float32,
                single_buffer_weights=False):
    """x: (B, D_in) f32.  pparams: output of prepare_params (padded bf16 Wt,
    f32 b).  d_out: logical (unpadded) output width.  Run under jax.jit so the
    residual row-pad / final slice fuse with neighbouring ops."""
    B, d_in = x.shape
    assert d_in == pparams[0][0].shape[0], "x feature dim != first layer in-dim"
    d_out_p = pparams[-1][0].shape[1]

    # Batch tile: one grid step on single-TC chips (v5e/v6e), >=2 parallel
    # steps on dual-TC v7x; capped at 256 rows to avoid vreg spills from the
    # unrolled layer chain's live f32 activations.
    n_tc = _tensorcores_per_chip()
    b8 = _round_up(max(B, 1), 8)
    if block_b is None:
        target_steps = 2 if n_tc >= 2 else 1
        block_b = min(256, max(8, _round_up(-(-b8 // target_steps), 8)))
    B_p = _round_up(B, block_b)

    # Only a residual batch-row pad (zeros); no feature-axis pad, no cast.
    x_p = x if B_p == B else jnp.pad(x, ((0, B_p - B), (0, 0)))

    grid = (B_p // block_b,)

    # x block: (block_b, d_in) -- last dim equals the full array dim, so the
    # 128-lane divisibility rule does not apply.
    in_specs = [pl.BlockSpec((block_b, d_in), lambda i: (i, 0))]
    flat_args = [x_p]
    for wt, b in pparams:
        in_specs.append(_resident_spec(wt.shape, single_buffer_weights))
        in_specs.append(_resident_spec(b.shape, single_buffer_weights))
        flat_args.extend([wt, b])

    out_spec = pl.BlockSpec((block_b, d_out_p), lambda i: (i, 0))

    out_p = pl.pallas_call(
        mlp_kernel,
        out_shape=jax.ShapeDtypeStruct((B_p, d_out_p), out_dtype),
        grid=grid,
        in_specs=in_specs,
        out_specs=out_spec,
        compiler_params=pltpu.CompilerParams(
            dimension_semantics=("parallel",),
            vmem_limit_bytes=32 * 1024 * 1024,
        ),
    )(*flat_args)

    # Slice back to the logical (B, d_out); padded rows/lanes are discarded.
    return out_p[:B, :d_out]


# --------------------------------------------------------------------------- #
# Init + reference                                                             #
# --------------------------------------------------------------------------- #
def init_mlp_params(key, input_size, hidden_size=(32, 32, 32, 32)):
    """Deterministic init mimicking torch.nn.Linear default
    (U(-1/sqrt(fan_in), 1/sqrt(fan_in))).  Weights stored as W.T: (in, out)."""
    params = []
    fan_in = input_size
    for d_out in hidden_size:
        key, kw, kb = jax.random.split(key, 3)
        bound = 1.0 / jnp.sqrt(jnp.float32(fan_in))
        wt = jax.random.uniform(kw, (fan_in, d_out), jnp.float32, -bound, bound)
        b = jax.random.uniform(kb, (1, d_out), jnp.float32, -bound, bound)
        params.append((wt, b))
        fan_in = d_out
    return params


def mlp_reference(x, params, mxu_dtype=jnp.float32):
    """Pure-JAX reference.  With mxu_dtype=bf16 it mimics the kernel's
    bf16-input / f32-accumulate matmuls for a tight numerical comparison."""
    h = x
    n = len(params)
    for i, (wt, b) in enumerate(params):
        h = jnp.dot(h.astype(mxu_dtype), wt.astype(mxu_dtype),
                    preferred_element_type=jnp.float32) + b
        if i < n - 1:
            h = jnp.maximum(h, 0.0)
    return h


# --------------------------------------------------------------------------- #
if __name__ == "__main__":
    key = jax.random.PRNGKey(0)
    input_size = 16
    hidden = (32, 32, 32, 32)

    k_x, k_p, k_x2 = jax.random.split(key, 3)
    params = init_mlp_params(k_p, input_size, hidden)
    pparams = prepare_params(params)   # one-time pad + bf16 cast (hoisted)

    fwd = jax.jit(
        mlp_forward,
        static_argnames=("d_out", "block_b", "out_dtype", "single_buffer_weights"),
    )

    # Main check: B=64 (grid=(1,) on v5e/v6e, 2 parallel steps on v7x).
    B = 64
    x = jax.random.normal(k_x, (B, input_size), jnp.float32)
    out = jax.block_until_ready(fwd(x, pparams, d_out=hidden[-1]))
    assert out.shape == (B, hidden[-1])

    # Tight check vs. a reference using the same bf16-in / f32-acc matmuls.
    ref_bf16 = mlp_reference(x, params, mxu_dtype=jnp.bfloat16)
    assert jnp.allclose(out, ref_bf16, atol=2e-3, rtol=2e-3), "mismatch vs bf16 reference"
    # Loose sanity check vs. pure-f32 PyTorch-equivalent math (bf16 MXU inputs).
    ref_f32 = mlp_reference(x, params, mxu_dtype=jnp.float32)
    assert jnp.allclose(out, ref_f32, atol=1e-1, rtol=1e-1), "mismatch vs f32 reference"

    # Exercise the residual batch-row padding path (B not a multiple of 8).
    B2 = 10
    x2 = jax.random.normal(k_x2, (B2, input_size), jnp.float32)
    out2 = jax.block_until_ready(fwd(x2, pparams, d_out=hidden[-1]))
    assert out2.shape == (B2, hidden[-1])
    ref2 = mlp_reference(x2, params, mxu_dtype=jnp.bfloat16)
    assert jnp.allclose(out2, ref2, atol=2e-3, rtol=2e-3), "mismatch (padded-batch path)"

    print("KERNEL_OK")
</pallas_src>

<mosaic_0001>
module attributes {stable_mosaic.version = 11 : i64} {
  func.func @mlp_kernel(%arg0: i32, %arg1: memref<64x16xf32, #tpu.memory_space<vmem>>, %arg2: memref<16x128xbf16, #tpu.memory_space<vmem>>, %arg3: memref<1x128xf32, #tpu.memory_space<vmem>>, %arg4: memref<128x128xbf16, #tpu.memory_space<vmem>>, %arg5: memref<1x128xf32, #tpu.memory_space<vmem>>, %arg6: memref<128x128xbf16, #tpu.memory_space<vmem>>, %arg7: memref<1x128xf32, #tpu.memory_space<vmem>>, %arg8: memref<128x128xbf16, #tpu.memory_space<vmem>>, %arg9: memref<1x128xf32, #tpu.memory_space<vmem>>, %arg10: memref<64x128xf32, #tpu.memory_space<vmem>>) attributes {dimension_semantics = [#tpu.dimension_semantics<parallel>], iteration_bounds = array<i64: 1>, scalar_prefetch = 0 : i64, scratch_operands = 0 : i64, tpu.core_type = #tpu.core_type<tc>, window_params = [{transform_indices = @transform_0, window_bounds = array<i64: 64, 16>}, {pipeline_mode = #tpu.pipeline_mode<synchronous>, transform_indices = @transform_1, window_bounds = array<i64: 16, 128>}, {pipeline_mode = #tpu.pipeline_mode<synchronous>, transform_indices = @transform_2, window_bounds = array<i64: 1, 128>}, {pipeline_mode = #tpu.pipeline_mode<synchronous>, transform_indices = @transform_3, window_bounds = array<i64: 128, 128>}, {pipeline_mode = #tpu.pipeline_mode<synchronous>, transform_indices = @transform_4, window_bounds = array<i64: 1, 128>}, {pipeline_mode = #tpu.pipeline_mode<synchronous>, transform_indices = @transform_5, window_bounds = array<i64: 128, 128>}, {pipeline_mode = #tpu.pipeline_mode<synchronous>, transform_indices = @transform_6, window_bounds = array<i64: 1, 128>}, {pipeline_mode = #tpu.pipeline_mode<synchronous>, transform_indices = @transform_7, window_bounds = array<i64: 128, 128>}, {pipeline_mode = #tpu.pipeline_mode<synchronous>, transform_indices = @transform_8, window_bounds = array<i64: 1, 128>}, {transform_indices = @transform_9, window_bounds = array<i64: 64, 128>}]} {
    %c0 = arith.constant 0 : index
    %c0_0 = arith.constant 0 : index
    %0 = vector.load %arg1[%c0, %c0_0] : memref<64x16xf32, #tpu.memory_space<vmem>>, vector<64x16xf32>
    %1 = arith.truncf %0 : vector<64x16xf32> to vector<64x16xbf16>
    %c0_1 = arith.constant 0 : index
    %c0_2 = arith.constant 0 : index
    %2 = vector.load %arg2[%c0_1, %c0_2] : memref<16x128xbf16, #tpu.memory_space<vmem>>, vector<16x128xbf16>
    %cst = arith.constant dense<0.000000e+00> : vector<64x128xf32>
    %3 = tpu.matmul %1, %2, %cst {dimension_numbers = #tpu.dot_dimension_numbers<[1], [0], [0], [1], [0, 0, 1, 1], [], []>} : vector<64x16xbf16>, vector<16x128xbf16>, vector<64x128xf32> -> vector<64x128xf32>
    %c0_3 = arith.constant 0 : index
    %c0_4 = arith.constant 0 : index
    %4 = vector.load %arg3[%c0_3, %c0_4] : memref<1x128xf32, #tpu.memory_space<vmem>>, vector<1x128xf32>
    %5 = vector.broadcast %4 : vector<1x128xf32> to vector<64x128xf32>
    %6 = arith.addf %3, %5 : vector<64x128xf32>
    %cst_5 = arith.constant 0.000000e+00 : f32
    %7 = vector.broadcast %cst_5 : f32 to vector<64x128xf32>
    %8 = arith.maximumf %6, %7 : vector<64x128xf32>
    %9 = arith.truncf %8 : vector<64x128xf32> to vector<64x128xbf16>
    %c0_6 = arith.constant 0 : index
    %c0_7 = arith.constant 0 : index
    %10 = vector.load %arg4[%c0_6, %c0_7] : memref<128x128xbf16, #tpu.memory_space<vmem>>, vector<128x128xbf16>
    %cst_8 = arith.constant dense<0.000000e+00> : vector<64x128xf32>
    %11 = tpu.matmul %9, %10, %cst_8 {dimension_numbers = #tpu.dot_dimension_numbers<[1], [0], [0], [1], [0, 0, 1, 1], [], []>} : vector<64x128xbf16>, vector<128x128xbf16>, vector<64x128xf32> -> vector<64x128xf32>
    %c0_9 = arith.constant 0 : index
    %c0_10 = arith.constant 0 : index
    %12 = vector.load %arg5[%c0_9, %c0_10] : memref<1x128xf32, #tpu.memory_space<vmem>>, vector<1x128xf32>
    %13 = vector.broadcast %12 : vector<1x128xf32> to vector<64x128xf32>
    %14 = arith.addf %11, %13 : vector<64x128xf32>
    %cst_11 = arith.constant 0.000000e+00 : f32
    %15 = vector.broadcast %cst_11 : f32 to vector<64x128xf32>
    %16 = arith.maximumf %14, %15 : vector<64x128xf32>
    %17 = arith.truncf %16 : vector<64x128xf32> to vector<64x128xbf16>
    %c0_12 = arith.constant 0 : index
    %c0_13 = arith.constant 0 : index
    %18 = vector.load %arg6[%c0_12, %c0_13] : memref<128x128xbf16, #tpu.memory_space<vmem>>, vector<128x128xbf16>
    %cst_14 = arith.constant dense<0.000000e+00> : vector<64x128xf32>
    %19 = tpu.matmul %17, %18, %cst_14 {dimension_numbers = #tpu.dot_dimension_numbers<[1], [0], [0], [1], [0, 0, 1, 1], [], []>} : vector<64x128xbf16>, vector<128x128xbf16>, vector<64x128xf32> -> vector<64x128xf32>
    %c0_15 = arith.constant 0 : index
    %c0_16 = arith.constant 0 : index
    %20 = vector.load %arg7[%c0_15, %c0_16] : memref<1x128xf32, #tpu.memory_space<vmem>>, vector<1x128xf32>
    %21 = vector.broadcast %20 : vector<1x128xf32> to vector<64x128xf32>
    %22 = arith.addf %19, %21 : vector<64x128xf32>
    %cst_17 = arith.constant 0.000000e+00 : f32
    %23 = vector.broadcast %cst_17 : f32 to vector<64x128xf32>
    %24 = arith.maximumf %22, %23 : vector<64x128xf32>
    %25 = arith.truncf %24 : vector<64x128xf32> to vector<64x128xbf16>
    %c0_18 = arith.constant 0 : index
    %c0_19 = arith.constant 0 : index
    %26 = vector.load %arg8[%c0_18, %c0_19] : memref<128x128xbf16, #tpu.memory_space<vmem>>, vector<128x128xbf16>
    %cst_20 = arith.constant dense<0.000000e+00> : vector<64x128xf32>
    %27 = tpu.matmul %25, %26, %cst_20 {dimension_numbers = #tpu.dot_dimension_numbers<[1], [0], [0], [1], [0, 0, 1, 1], [], []>} : vector<64x128xbf16>, vector<128x128xbf16>, vector<64x128xf32> -> vector<64x128xf32>
    %c0_21 = arith.constant 0 : index
    %c0_22 = arith.constant 0 : index
    %28 = vector.load %arg9[%c0_21, %c0_22] : memref<1x128xf32, #tpu.memory_space<vmem>>, vector<1x128xf32>
    %29 = vector.broadcast %28 : vector<1x128xf32> to vector<64x128xf32>
    %30 = arith.addf %27, %29 : vector<64x128xf32>
    %c0_23 = arith.constant 0 : index
    %c0_24 = arith.constant 0 : index
    %31 = vector.load %arg10[%c0_23, %c0_24] : memref<64x128xf32, #tpu.memory_space<vmem>>, vector<64x128xf32>
    tpu.vector_store %arg10[%c0_23, %c0_24], %30 {strides = array<i32>} : memref<64x128xf32, #tpu.memory_space<vmem>>, vector<64x128xf32>,
    return
  }
  func.func @transform_0(%arg0: i32) -> (i32, i32) {
    %c0_i32 = arith.constant 0 : i32
    %c0_i32_0 = arith.constant 0 : i32
    return %arg0, %c0_i32 : i32, i32
  }
  func.func @transform_1(%arg0: i32) -> (i32, i32) {
    %c0_i32 = arith.constant 0 : i32
    %c0_i32_0 = arith.constant 0 : i32
    %c0_i32_1 = arith.constant 0 : i32
    return %c0_i32, %c0_i32_0 : i32, i32
  }
  func.func @transform_2(%arg0: i32) -> (i32, i32) {
    %c0_i32 = arith.constant 0 : i32
    %c0_i32_0 = arith.constant 0 : i32
    %c0_i32_1 = arith.constant 0 : i32
    return %c0_i32, %c0_i32_0 : i32, i32
  }
  func.func @transform_3(%arg0: i32) -> (i32, i32) {
    %c0_i32 = arith.constant 0 : i32
    %c0_i32_0 = arith.constant 0 : i32
    %c0_i32_1 = arith.constant 0 : i32
    return %c0_i32, %c0_i32_0 : i32, i32
  }
  func.func @transform_4(%arg0: i32) -> (i32, i32) {
    %c0_i32 = arith.constant 0 : i32
    %c0_i32_0 = arith.constant 0 : i32
    %c0_i32_1 = arith.constant 0 : i32
    return %c0_i32, %c0_i32_0 : i32, i32
  }
  func.func @transform_5(%arg0: i32) -> (i32, i32) {
    %c0_i32 = arith.constant 0 : i32
    %c0_i32_0 = arith.constant 0 : i32
    %c0_i32_1 = arith.constant 0 : i32
    return %c0_i32, %c0_i32_0 : i32, i32
  }
  func.func @transform_6(%arg0: i32) -> (i32, i32) {
    %c0_i32 = arith.constant 0 : i32
    %c0_i32_0 = arith.constant 0 : i32
    %c0_i32_1 = arith.constant 0 : i32
    return %c0_i32, %c0_i32_0 : i32, i32
  }
  func.func @transform_7(%arg0: i32) -> (i32, i32) {
    %c0_i32 = arith.constant 0 : i32
    %c0_i32_0 = arith.constant 0 : i32
    %c0_i32_1 = arith.constant 0 : i32
    return %c0_i32, %c0_i32_0 : i32, i32
  }
  func.func @transform_8(%arg0: i32) -> (i32, i32) {
    %c0_i32 = arith.constant 0 : i32
    %c0_i32_0 = arith.constant 0 : i32
    %c0_i32_1 = arith.constant 0 : i32
    return %c0_i32, %c0_i32_0 : i32, i32
  }
  func.func @transform_9(%arg0: i32) -> (i32, i32) {
    %c0_i32 = arith.constant 0 : i32
    %c0_i32_0 = arith.constant 0 : i32
    return %arg0, %c0_i32 : i32, i32
  }
}

</mosaic_0001>

<llo_original>
// kernel: mlp_forward.1
$region0: #{mlp_forward.1}
  #allocation0 [shape = 'u32[]', space=smem, size = 0x4, offset = 0x4, fixed_abs, tag = 'smem constant byte address 0x4 - core index']
  #allocation1 [shape = 'u32[144,128]{1,0:T(1,128)}', space=vmem, size = 0x12000, scoped, tag = 'internal scratch']
  %s0 = inlined_call_operand.vmem [shape: f32[64,16], index: 0, kind: input, shape index: {}]
  %s1 = inlined_call_operand.vmem [shape: bf16[16,128], index: 1, kind: input, shape index: {}]
  %s2 = inlined_call_operand.vmem [shape: f32[1,128], index: 2, kind: input, shape index: {}]
  %s3 = inlined_call_operand.vmem [shape: bf16[128,128], index: 3, kind: input, shape index: {}]
  %s4 = inlined_call_operand.vmem [shape: f32[1,128], index: 4, kind: input, shape index: {}]
  %s5 = inlined_call_operand.hbm [shape: bf16[128,128], index: 5, kind: input, shape index: {}]
  %s6 = inlined_call_operand.vmem [shape: f32[1,128], index: 6, kind: input, shape index: {}]
  %s7 = inlined_call_operand.hbm [shape: bf16[128,128], index: 7, kind: input, shape index: {}]
  %s8 = inlined_call_operand.vmem [shape: f32[1,128], index: 8, kind: input, shape index: {}]
  %s9 = inlined_call_operand.vmem [shape: f32[64,128], index: 9, kind: output, shape index: {}]
  %s10 = sld [smem:[#allocation0]]
  $region54: #{mlp_forward.1} parent=0
    _
  %s12 = ssub.s32 1, %s10
  %s13 = scalar_select 0, %s12, %s10
  $region1: #{mlp_forward.1} parent=0
    #allocation2 [shape = 'u8[32768]{0}', space=vmem, size = 0x8000, scoped, tag = 'input window, operand 5, single buffered']
    #allocation3 [shape = 's32[1]{0}', space=sflag, size = 0x4, scoped, tag = 'scoped memory for mlp_forward.1']
    #allocation4 [shape = 'u8[32768]{0}', space=vmem, size = 0x8000, scoped, tag = 'input window, operand 7, single buffered']
    #allocation5 [shape = 's32[1]{0}', space=sflag, size = 0x4, scoped, tag = 'scoped memory for mlp_forward.1']
    %14 = vsyncpa [#allocation3], 0
    %15 = vsyncpa [#allocation5], 0
    // Predicated region
    $region2: #{mlp_forward.1} parent=1 // pred_check
      _
    $region3: #{mlp_forward.1} parent=1 // pred_check_branch
      %17 = sbr.rel (0) target = $region5
    $region4: #{mlp_forward.1} parent=1 // pred_region
      _
    $region5: #{mlp_forward.1} parent=1 // pred_fallthru
      _
    // Predicated region
    $region6: #{mlp_forward.1} parent=1 // pred_check
      _
    $region7: #{mlp_forward.1} parent=1 // pred_check_branch
      %19 = sbr.rel (0) target = $region9
    $region8: #{mlp_forward.1} parent=1 // pred_region
      _
    $region9: #{mlp_forward.1} parent=1 // pred_fallthru
      _
    // Predicated region
    $region10: #{mlp_forward.1} parent=1 // pred_check
      _
    $region11: #{mlp_forward.1} parent=1 // pred_check_branch
      %21 = sbr.rel (0) target = $region13
    $region12: #{mlp_forward.1} parent=1 // pred_region
      _
    $region13: #{mlp_forward.1} parent=1 // pred_fallthru
      _
    // Predicated region
    $region14: #{mlp_forward.1} parent=1 // pred_check
      _
    $region15: #{mlp_forward.1} parent=1 // pred_check_branch
      %23 = sbr.rel (0) target = $region17
    $region16: #{mlp_forward.1} parent=1 // pred_region
      _
    $region17: #{mlp_forward.1} parent=1 // pred_fallthru
      _
    // Predicated region
    $region18: #{mlp_forward.1} parent=1 // pred_check
      _
    $region19: #{mlp_forward.1} parent=1 // pred_check_branch
      %25 = sbr.rel (0) target = $region21
    $region20: #{mlp_forward.1} parent=1 // pred_region
      _
    $region21: #{mlp_forward.1} parent=1 // pred_fallthru
      _
    // Predicated region
    $region22: #{mlp_forward.1} parent=1 // pred_check
      _
    $region23: #{mlp_forward.1} parent=1 // pred_check_branch
      %27 = sbr.rel (0) target = $region25
    $region24: #{mlp_forward.1} parent=1 // pred_region
      %s29 = ssub.s32 1024, 1024
      %30 = vsyncadd [#allocation3], %s29
      %s31 = sshll.u32 [#allocation2], 4
      %s32 = int_to_ptr.vmem [resolvable:$true] %s31
      %37 = dma.hbm_to_vmem [thread:$0]  %s5, 1024, %s32, [#allocation3], 64, 64, 4
    $region25: #{mlp_forward.1} parent=1 // pred_fallthru
      _
    // Predicated region
    $region26: #{mlp_forward.1} parent=1 // pred_check
      _
    $region27: #{mlp_forward.1} parent=1 // pred_check_branch
      %39 = sbr.rel (0) target = $region29
    $region28: #{mlp_forward.1} parent=1 // pred_region
      _
    $region29: #{mlp_forward.1} parent=1 // pred_fallthru
      _
    // Predicated region
    $region30: #{mlp_forward.1} parent=1 // pred_check
      _
    $region31: #{mlp_forward.1} parent=1 // pred_check_branch
      %41 = sbr.rel (0) target = $region33
    $region32: #{mlp_forward.1} parent=1 // pred_region
      %s43 = ssub.s32 1024, 1024
      %44 = vsyncadd [#allocation5], %s43
      %s45 = sshll.u32 [#allocation4], 4
      %s46 = int_to_ptr.vmem [resolvable:$true] %s45
      %51 = dma.hbm_to_vmem [thread:$0]  %s7, 1024, %s46, [#allocation5], 64, 64, 4
    $region33: #{mlp_forward.1} parent=1 // pred_fallthru
      _
    // Predicated region
    $region34: #{mlp_forward.1} parent=1 // pred_check
      _
    $region35: #{mlp_forward.1} parent=1 // pred_check_branch
      %53 = sbr.rel (0) target = $region37
    $region36: #{mlp_forward.1} parent=1 // pred_region
      _
    $region37: #{mlp_forward.1} parent=1 // pred_fallthru
      _
    // Predicated region
    $region38: #{mlp_forward.1} parent=1 // pred_check
      _
    $region39: #{mlp_forward.1} parent=1 // pred_check_branch
      %55 = sbr.rel (0) target = $region41
    $region40: #{mlp_forward.1} parent=1 // pred_region
      %56 = dma.done [#allocation3], 1024
    $region41: #{mlp_forward.1} parent=1 // pred_fallthru
      _
    // Predicated region
    $region42: #{mlp_forward.1} parent=1 // pred_check
      _
    $region43: #{mlp_forward.1} parent=1 // pred_check_branch
      %58 = sbr.rel (0) target = $region45
    $region44: #{mlp_forward.1} parent=1 // pred_region
      %59 = dma.done [#allocation5], 1024
    $region45: #{mlp_forward.1} parent=1 // pred_fallthru
      _
    %v61 = vld [vmem:[%s0] sm:$0xff]
    %v62 = vld [vmem:[%s0 + $0x8] sm:$0xff]
    %v63 = vld [vmem:[%s0 + $0x10] sm:$0xff]
    %v64 = vld [vmem:[%s0 + $0x18] sm:$0xff]
    %v65 = vld [vmem:[%s0 + $0x20] sm:$0xff]
    %v66 = vld [vmem:[%s0 + $0x28] sm:$0xff]
    %v67 = vld [vmem:[%s0 + $0x30] sm:$0xff]
    %v68 = vld [vmem:[%s0 + $0x38] sm:$0xff]
    %v69 = vpack.c.bf16 %v62, %v61
    %v70 = vpack.c.bf16 %v64, %v63
    %v71 = vpack.c.bf16 %v66, %v65
    %v72 = vpack.c.bf16 %v68, %v67
    %v73 = vld [vmem:[%s1] sm:$0xf]
    %v74 = vld [vmem:[%s1 + $0x4] sm:$0xf]
    %v75 = vld [vmem:[%s2] sm:$0x1]
    %v77 = vlaneseq
    %v78 = vshrl.u32 %v77, 7
    %v79 = vsub.s32 0, %v78
    %v80 = vrot.slane %v75, %v79
    %v84 = vunpack.c.l.b16 %v73
    %v85 = vunpack.c.l.b16 %v74
    %v86 = vpack.c.b16 %v85, %v84
    %vm88 = vcmask 130048
    %v90 = vsel %vm88, %v69, 0
    %v93 = vsel %vm88, %v70, 0
    %v96 = vsel %vm88, %v71, 0
    %v99 = vsel %vm88, %v72, 0
    %101 = vmatprep.subr.bf16.mxu0 0
    %102 = vmatpush1.bf16.msra.mxu0 %v86
    %103 = vmatprep.subr.bf16.mxu0 0
    %104 = vmatpush1.bf16.msra.mxu0 0
    %105 = vmatprep.subr.bf16.mxu0 0
    %106 = vmatpush1.bf16.msra.mxu0 0
    %107 = vmatprep.subr.bf16.mxu0 0
    %108 = vmatpush1.bf16.msra.mxu0 0
    %109 = vmatprep.subr.bf16.mxu0 0
    %110 = vmatpush1.bf16.msra.mxu0 0
    %111 = vmatprep.subr.bf16.mxu0 0
    %112 = vmatpush1.bf16.msra.mxu0 0
    %113 = vmatprep.subr.bf16.mxu0 0
    %114 = vmatpush1.bf16.msra.mxu0 0
    %115 = vmatprep.subr.bf16.mxu0 0
    %116 = vmatpush1.bf16.msra.mxu0 0
    %117 = vmatprep.subr.bf16.mxu0 0
    %118 = vmatpush1.bf16.msra.mxu0 0
    %119 = vmatprep.subr.bf16.mxu0 0
    %120 = vmatpush1.bf16.msra.mxu0 0
    %121 = vmatprep.subr.bf16.mxu0 0
    %122 = vmatpush1.bf16.msra.mxu0 0
    %123 = vmatprep.subr.bf16.mxu0 0
    %124 = vmatpush1.bf16.msra.mxu0 0
    %125 = vmatprep.subr.bf16.mxu0 0
    %126 = vmatpush1.bf16.msra.mxu0 0
    %127 = vmatprep.subr.bf16.mxu0 0
    %128 = vmatpush1.bf16.msra.mxu0 0
    %129 = vmatprep.subr.bf16.mxu0 0
    %130 = vmatpush1.bf16.msra.mxu0 0
    %131 = vmatprep.subr.bf16.mxu0 0
    %132 = vmatpush1.bf16.msra.mxu0 0
    %133 = vmatprep.mubr.bf16.mxu0 0
    %134 = vmatmul.mubr.bf16.gmra.mrb[0].mxu0 %v90
    %v135 = vpop.f32.mrb[0].mxu0
    %v136 = vadd.f32 %v80, %v135
    %v137 = vpop.f32.mrb[0].mxu0
    %v138 = vpop.f32.mrb[0].mxu0
    %v139 = vadd.f32 %v80, %v138
    %v140 = vpop.f32.mrb[0].mxu0
    %141 = vmatprep.mubr.bf16.mxu0 0
    %142 = vmatmul.mubr.bf16.gmra.mrb[0].mxu0 %v93
    %v143 = vpop.f32.mrb[0].mxu0
    %v144 = vadd.f32 %v80, %v143
    %v145 = vpop.f32.mrb[0].mxu0
    %v146 = vpop.f32.mrb[0].mxu0
    %v147 = vadd.f32 %v80, %v146
    %v148 = vpop.f32.mrb[0].mxu0
    %149 = vmatprep.mubr.bf16.mxu0 0
    %150 = vmatmul.mubr.bf16.gmra.mrb[0].mxu0 %v96
    %v151 = vpop.f32.mrb[0].mxu0
    %v152 = vadd.f32 %v80, %v151
    %v153 = vpop.f32.mrb[0].mxu0
    %v154 = vpop.f32.mrb[0].mxu0
    %v155 = vadd.f32 %v80, %v154
    %v156 = vpop.f32.mrb[0].mxu0
    %157 = vmatprep.mubr.bf16.mxu0 0
    %158 = vmatmul.mubr.bf16.gmra.mrb[0].mxu0 %v99
    %v159 = vpop.f32.mrb[0].mxu0
    %v160 = vadd.f32 %v80, %v159
    %v161 = vpop.f32.mrb[0].mxu0
    %v162 = vpop.f32.mrb[0].mxu0
    %v163 = vadd.f32 %v80, %v162
    %v164 = vpop.f32.mrb[0].mxu0
    %165 = vdwg.mxu0
    %v166 = vmax.f32 %v136, 0.0
    %v167 = vmax.f32 %v139, 0.0
    %v168 = vmax.f32 %v144, 0.0
    %v169 = vmax.f32 %v147, 0.0
    %v170 = vmax.f32 %v152, 0.0
    %v171 = vmax.f32 %v155, 0.0
    %v172 = vmax.f32 %v160, 0.0
    %v173 = vmax.f32 %v163, 0.0
    %v174 = vpack.c.bf16 %v167, %v166
    %v175 = vpack.c.bf16 %v169, %v168
    %v176 = vpack.c.bf16 %v171, %v170
    %v177 = vpack.c.bf16 %v173, %v172
    %v178 = vld [vmem:[%s3] sm:$0xf]
    %v179 = vld [vmem:[%s3 + $0x4] sm:$0xf]
    %v180 = vld [vmem:[%s3 + $0x8] sm:$0xf]
    %v181 = vld [vmem:[%s3 + $0xc] sm:$0xf]
    %v182 = vld [vmem:[%s3 + $0x10] sm:$0xf]
    %v183 = vld [vmem:[%s3 + $0x14] sm:$0xf]
    %v184 = vld [vmem:[%s3 + $0x18] sm:$0xf]
    %v185 = vld [vmem:[%s3 + $0x1c] sm:$0xf]
    %v186 = vld [vmem:[%s3 + $0x20] sm:$0xf]
    %v187 = vld [vmem:[%s3 + $0x24] sm:$0xf]
    %v188 = vld [vmem:[%s3 + $0x28] sm:$0xf]
    %v189 = vld [vmem:[%s3 + $0x2c] sm:$0xf]
    %v190 = vld [vmem:[%s3 + $0x30] sm:$0xf]
    %v191 = vld [vmem:[%s3 + $0x34] sm:$0xf]
    %v192 = vld [vmem:[%s3 + $0x38] sm:$0xf]
    %v193 = vld [vmem:[%s3 + $0x3c] sm:$0xf]
    %v194 = vld [vmem:[%s4] sm:$0x1]
    %v196 = vlaneseq
    %v197 = vshrl.u32 %v196, 7
    %v198 = vsub.s32 0, %v197
    %v199 = vrot.slane %v194, %v198
    %v217 = vunpack.c.l.b16 %v178
    %v218 = vunpack.c.l.b16 %v179
    %v219 = vunpack.c.l.b16 %v180
    %v220 = vunpack.c.l.b16 %v181
    %v221 = vunpack.c.l.b16 %v182
    %v222 = vunpack.c.l.b16 %v183
    %v223 = vunpack.c.l.b16 %v184
    %v224 = vunpack.c.l.b16 %v185
    %v225 = vunpack.c.l.b16 %v186
    %v226 = vunpack.c.l.b16 %v187
    %v227 = vunpack.c.l.b16 %v188
    %v228 = vunpack.c.l.b16 %v189
    %v229 = vunpack.c.l.b16 %v190
    %v230 = vunpack.c.l.b16 %v191
    %v231 = vunpack.c.l.b16 %v192
    %v232 = vunpack.c.l.b16 %v193
    %v233 = vpack.c.b16 %v218, %v217
    %v234 = vpack.c.b16 %v220, %v219
    %v235 = vpack.c.b16 %v222, %v221
    %v236 = vpack.c.b16 %v224, %v223
    %v237 = vpack.c.b16 %v226, %v225
    %v238 = vpack.c.b16 %v228, %v227
    %v239 = vpack.c.b16 %v230, %v229
    %v240 = vpack.c.b16 %v232, %v231
    %249 = vmatprep.subr.bf16.mxu0 0
    %250 = vmatpush1.bf16.msra.mxu0 %v233
    %251 = vmatprep.subr.bf16.mxu0 0
    %252 = vmatpush1.bf16.msra.mxu0 %v234
    %253 = vmatprep.subr.bf16.mxu0 0
    %254 = vmatpush1.bf16.msra.mxu0 %v235
    %255 = vmatprep.subr.bf16.mxu0 0
    %256 = vmatpush1.bf16.msra.mxu0 %v236
    %257 = vmatprep.subr.bf16.mxu0 0
    %258 = vmatpush1.bf16.msra.mxu0 %v237
    %259 = vmatprep.subr.bf16.mxu0 0
    %260 = vmatpush1.bf16.msra.mxu0 %v238
    %261 = vmatprep.subr.bf16.mxu0 0
    %262 = vmatpush1.bf16.msra.mxu0 %v239
    %263 = vmatprep.subr.bf16.mxu0 0
    %264 = vmatpush1.bf16.msra.mxu0 %v240
    %265 = vmatprep.subr.bf16.mxu0 0
    %266 = vmatpush1.bf16.msra.mxu0 0
    %267 = vmatprep.subr.bf16.mxu0 0
    %268 = vmatpush1.bf16.msra.mxu0 0
    %269 = vmatprep.subr.bf16.mxu0 0
    %270 = vmatpush1.bf16.msra.mxu0 0
    %271 = vmatprep.subr.bf16.mxu0 0
    %272 = vmatpush1.bf16.msra.mxu0 0
    %273 = vmatprep.subr.bf16.mxu0 0
    %274 = vmatpush1.bf16.msra.mxu0 0
    %275 = vmatprep.subr.bf16.mxu0 0
    %276 = vmatpush1.bf16.msra.mxu0 0
    %277 = vmatprep.subr.bf16.mxu0 0
    %278 = vmatpush1.bf16.msra.mxu0 0
    %279 = vmatprep.subr.bf16.mxu0 0
    %280 = vmatpush1.bf16.msra.mxu0 0
    %281 = vmatprep.mubr.bf16.mxu0 0
    %282 = vmatmul.mubr.bf16.gmra.mrb[0].mxu0 %v174
    %v283 = vpop.f32.mrb[0].mxu0
    %v284 = vadd.f32 %v199, %v283
    %v285 = vpop.f32.mrb[0].mxu0
    %v286 = vpop.f32.mrb[0].mxu0
    %v287 = vadd.f32 %v199, %v286
    %v288 = vpop.f32.mrb[0].mxu0
    %289 = vmatprep.mubr.bf16.mxu0 0
    %290 = vmatmul.mubr.bf16.gmra.mrb[0].mxu0 %v175
    %v291 = vpop.f32.mrb[0].mxu0
    %v292 = vadd.f32 %v199, %v291
    %v293 = vpop.f32.mrb[0].mxu0
    %v294 = vpop.f32.mrb[0].mxu0
    %v295 = vadd.f32 %v199, %v294
    %v296 = vpop.f32.mrb[0].mxu0
    %297 = vmatprep.mubr.bf16.mxu0 0
    %298 = vmatmul.mubr.bf16.gmra.mrb[0].mxu0 %v176
    %v299 = vpop.f32.mrb[0].mxu0
    %v300 = vadd.f32 %v199, %v299
    %v301 = vpop.f32.mrb[0].mxu0
    %v302 = vpop.f32.mrb[0].mxu0
    %v303 = vadd.f32 %v199, %v302
    %v304 = vpop.f32.mrb[0].mxu0
    %305 = vmatprep.mubr.bf16.mxu0 0
    %306 = vmatmul.mubr.bf16.gmra.mrb[0].mxu0 %v177
    %v307 = vpop.f32.mrb[0].mxu0
    %v308 = vadd.f32 %v199, %v307
    %v309 = vpop.f32.mrb[0].mxu0
    %v310 = vpop.f32.mrb[0].mxu0
    %v311 = vadd.f32 %v199, %v310
    %v312 = vpop.f32.mrb[0].mxu0
    %313 = vdwg.mxu0
    %v314 = vmax.f32 %v284, 0.0
    %v315 = vmax.f32 %v287, 0.0
    %v316 = vmax.f32 %v292, 0.0
    %v317 = vmax.f32 %v295, 0.0
    %v318 = vmax.f32 %v300, 0.0
    %v319 = vmax.f32 %v303, 0.0
    %v320 = vmax.f32 %v308, 0.0
    %v321 = vmax.f32 %v311, 0.0
    %v322 = vpack.c.bf16 %v315, %v314
    %v323 = vpack.c.bf16 %v317, %v316
    %v324 = vpack.c.bf16 %v319, %v318
    %v325 = vpack.c.bf16 %v321, %v320
    %v326 = vld [vmem:[#allocation2] sm:$0xf]
    %v327 = vld [vmem:[#allocation2 + $0x4] sm:$0xf]
    %v328 = vld [vmem:[#allocation2 + $0x8] sm:$0xf]
    %v329 = vld [vmem:[#allocation2 + $0xc] sm:$0xf]
    %v330 = vld [vmem:[#allocation2 + $0x10] sm:$0xf]
    %v331 = vld [vmem:[#allocation2 + $0x14] sm:$0xf]
    %v332 = vld [vmem:[#allocation2 + $0x18] sm:$0xf]
    %v333 = vld [vmem:[#allocation2 + $0x1c] sm:$0xf]
    %v334 = vld [vmem:[#allocation2 + $0x20] sm:$0xf]
    %v335 = vld [vmem:[#allocation2 + $0x24] sm:$0xf]
    %v336 = vld [vmem:[#allocation2 + $0x28] sm:$0xf]
    %v337 = vld [vmem:[#allocation2 + $0x2c] sm:$0xf]
    %v338 = vld [vmem:[#allocation2 + $0x30] sm:$0xf]
    %v339 = vld [vmem:[#allocation2 + $0x34] sm:$0xf]
    %v340 = vld [vmem:[#allocation2 + $0x38] sm:$0xf]
    %v341 = vld [vmem:[#allocation2 + $0x3c] sm:$0xf]
    %v342 = vld [vmem:[%s6] sm:$0x1]
    %v344 = vlaneseq
    %v345 = vshrl.u32 %v344, 7
    %v346 = vsub.s32 0, %v345
    %v347 = vrot.slane %v342, %v346
    %v365 = vunpack.c.l.b16 %v326
    %v366 = vunpack.c.l.b16 %v327
    %v367 = vunpack.c.l.b16 %v328
    %v368 = vunpack.c.l.b16 %v329
    %v369 = vunpack.c.l.b16 %v330
    %v370 = vunpack.c.l.b16 %v331
    %v371 = vunpack.c.l.b16 %v332
    %v372 = vunpack.c.l.b16 %v333
    %v373 = vunpack.c.l.b16 %v334
    %v374 = vunpack.c.l.b16 %v335
    %v375 = vunpack.c.l.b16 %v336
    %v376 = vunpack.c.l.b16 %v337
    %v377 = vunpack.c.l.b16 %v338
    %v378 = vunpack.c.l.b16 %v339
    %v379 = vunpack.c.l.b16 %v340
    %v380 = vunpack.c.l.b16 %v341
    %v381 = vpack.c.b16 %v366, %v365
    %v382 = vpack.c.b16 %v368, %v367
    %v383 = vpack.c.b16 %v370, %v369
    %v384 = vpack.c.b16 %v372, %v371
    %v385 = vpack.c.b16 %v374, %v373
    %v386 = vpack.c.b16 %v376, %v375
    %v387 = vpack.c.b16 %v378, %v377
    %v388 = vpack.c.b16 %v380, %v379
    %397 = vmatprep.subr.bf16.mxu0 0
    %398 = vmatpush1.bf16.msra.mxu0 %v381
    %399 = vmatprep.subr.bf16.mxu0 0
    %400 = vmatpush1.bf16.msra.mxu0 %v382
    %401 = vmatprep.subr.bf16.mxu0 0
    %402 = vmatpush1.bf16.msra.mxu0 %v383
    %403 = vmatprep.subr.bf16.mxu0 0
    %404 = vmatpush1.bf16.msra.mxu0 %v384
    %405 = vmatprep.subr.bf16.mxu0 0
    %406 = vmatpush1.bf16.msra.mxu0 %v385
    %407 = vmatprep.subr.bf16.mxu0 0
    %408 = vmatpush1.bf16.msra.mxu0 %v386
    %409 = vmatprep.subr.bf16.mxu0 0
    %410 = vmatpush1.bf16.msra.mxu0 %v387
    %411 = vmatprep.subr.bf16.mxu0 0
    %412 = vmatpush1.bf16.msra.mxu0 %v388
    %413 = vmatprep.subr.bf16.mxu0 0
    %414 = vmatpush1.bf16.msra.mxu0 0
    %415 = vmatprep.subr.bf16.mxu0 0
    %416 = vmatpush1.bf16.msra.mxu0 0
    %417 = vmatprep.subr.bf16.mxu0 0
    %418 = vmatpush1.bf16.msra.mxu0 0
    %419 = vmatprep.subr.bf16.mxu0 0
    %420 = vmatpush1.bf16.msra.mxu0 0
    %421 = vmatprep.subr.bf16.mxu0 0
    %422 = vmatpush1.bf16.msra.mxu0 0
    %423 = vmatprep.subr.bf16.mxu0 0
    %424 = vmatpush1.bf16.msra.mxu0 0
    %425 = vmatprep.subr.bf16.mxu0 0
    %426 = vmatpush1.bf16.msra.mxu0 0
    %427 = vmatprep.subr.bf16.mxu0 0
    %428 = vmatpush1.bf16.msra.mxu0 0
    %429 = vmatprep.mubr.bf16.mxu0 0
    %430 = vmatmul.mubr.bf16.gmra.mrb[0].mxu0 %v322
    %v431 = vpop.f32.mrb[0].mxu0
    %v432 = vadd.f32 %v347, %v431
    %v433 = vpop.f32.mrb[0].mxu0
    %v434 = vpop.f32.mrb[0].mxu0
    %v435 = vadd.f32 %v347, %v434
    %v436 = vpop.f32.mrb[0].mxu0
    %437 = vmatprep.mubr.bf16.mxu0 0
    %438 = vmatmul.mubr.bf16.gmra.mrb[0].mxu0 %v323
    %v439 = vpop.f32.mrb[0].mxu0
    %v440 = vadd.f32 %v347, %v439
    %v441 = vpop.f32.mrb[0].mxu0
    %v442 = vpop.f32.mrb[0].mxu0
    %v443 = vadd.f32 %v347, %v442
    %v444 = vpop.f32.mrb[0].mxu0
    %445 = vmatprep.mubr.bf16.mxu0 0
    %446 = vmatmul.mubr.bf16.gmra.mrb[0].mxu0 %v324
    %v447 = vpop.f32.mrb[0].mxu0
    %v448 = vadd.f32 %v347, %v447
    %v449 = vpop.f32.mrb[0].mxu0
    %v450 = vpop.f32.mrb[0].mxu0
    %v451 = vadd.f32 %v347, %v450
    %v452 = vpop.f32.mrb[0].mxu0
    %453 = vmatprep.mubr.bf16.mxu0 0
    %454 = vmatmul.mubr.bf16.gmra.mrb[0].mxu0 %v325
    %v455 = vpop.f32.mrb[0].mxu0
    %v456 = vadd.f32 %v347, %v455
    %v457 = vpop.f32.mrb[0].mxu0
    %v458 = vpop.f32.mrb[0].mxu0
    %v459 = vadd.f32 %v347, %v458
    %v460 = vpop.f32.mrb[0].mxu0
    %461 = vdwg.mxu0
    %v462 = vmax.f32 %v432, 0.0
    %v463 = vmax.f32 %v435, 0.0
    %v464 = vmax.f32 %v440, 0.0
    %v465 = vmax.f32 %v443, 0.0
    %v466 = vmax.f32 %v448, 0.0
    %v467 = vmax.f32 %v451, 0.0
    %v468 = vmax.f32 %v456, 0.0
    %v469 = vmax.f32 %v459, 0.0
    %v470 = vpack.c.bf16 %v463, %v462
    %v471 = vpack.c.bf16 %v465, %v464
    %v472 = vpack.c.bf16 %v467, %v466
    %v473 = vpack.c.bf16 %v469, %v468
    %v474 = vld [vmem:[#allocation4] sm:$0xf]
    %v475 = vld [vmem:[#allocation4 + $0x4] sm:$0xf]
    %v476 = vld [vmem:[#allocation4 + $0x8] sm:$0xf]
    %v477 = vld [vmem:[#allocation4 + $0xc] sm:$0xf]
    %v478 = vld [vmem:[#allocation4 + $0x10] sm:$0xf]
    %v479 = vld [vmem:[#allocation4 + $0x14] sm:$0xf]
    %v480 = vld [vmem:[#allocation4 + $0x18] sm:$0xf]
    %v481 = vld [vmem:[#allocation4 + $0x1c] sm:$0xf]
    %v482 = vld [vmem:[#allocation4 + $0x20] sm:$0xf]
    %v483 = vld [vmem:[#allocation4 + $0x24] sm:$0xf]
    %v484 = vld [vmem:[#allocation4 + $0x28] sm:$0xf]
    %v485 = vld [vmem:[#allocation4 + $0x2c] sm:$0xf]
    %v486 = vld [vmem:[#allocation4 + $0x30] sm:$0xf]
    %v487 = vld [vmem:[#allocation4 + $0x34] sm:$0xf]
    %v488 = vld [vmem:[#allocation4 + $0x38] sm:$0xf]
    %v489 = vld [vmem:[#allocation4 + $0x3c] sm:$0xf]
    %v490 = vld [vmem:[%s8] sm:$0x1]
    %v492 = vlaneseq
    %v493 = vshrl.u32 %v492, 7
    %v494 = vsub.s32 0, %v493
    %v495 = vrot.slane %v490, %v494
    %v513 = vunpack.c.l.b16 %v474
    %v514 = vunpack.c.l.b16 %v475
    %v515 = vunpack.c.l.b16 %v476
    %v516 = vunpack.c.l.b16 %v477
    %v517 = vunpack.c.l.b16 %v478
    %v518 = vunpack.c.l.b16 %v479
    %v519 = vunpack.c.l.b16 %v480
    %v520 = vunpack.c.l.b16 %v481
    %v521 = vunpack.c.l.b16 %v482
    %v522 = vunpack.c.l.b16 %v483
    %v523 = vunpack.c.l.b16 %v484
    %v524 = vunpack.c.l.b16 %v485
    %v525 = vunpack.c.l.b16 %v486
    %v526 = vunpack.c.l.b16 %v487
    %v527 = vunpack.c.l.b16 %v488
    %v528 = vunpack.c.l.b16 %v489
    %v529 = vpack.c.b16 %v514, %v513
    %v530 = vpack.c.b16 %v516, %v515
    %v531 = vpack.c.b16 %v518, %v517
    %v532 = vpack.c.b16 %v520, %v519
    %v533 = vpack.c.b16 %v522, %v521
    %v534 = vpack.c.b16 %v524, %v523
    %v535 = vpack.c.b16 %v526, %v525
    %v536 = vpack.c.b16 %v528, %v527
    %545 = vmatprep.subr.bf16.mxu0 0
    %546 = vmatpush1.bf16.msra.mxu0 %v529
    %547 = vmatprep.subr.bf16.mxu0 0
    %548 = vmatpush1.bf16.msra.mxu0 %v530
    %549 = vmatprep.subr.bf16.mxu0 0
    %550 = vmatpush1.bf16.msra.mxu0 %v531
    %551 = vmatprep.subr.bf16.mxu0 0
    %552 = vmatpush1.bf16.msra.mxu0 %v532
    %553 = vmatprep.subr.bf16.mxu0 0
    %554 = vmatpush1.bf16.msra.mxu0 %v533
    %555 = vmatprep.subr.bf16.mxu0 0
    %556 = vmatpush1.bf16.msra.mxu0 %v534
    %557 = vmatprep.subr.bf16.mxu0 0
    %558 = vmatpush1.bf16.msra.mxu0 %v535
    %559 = vmatprep.subr.bf16.mxu0 0
    %560 = vmatpush1.bf16.msra.mxu0 %v536
    %561 = vmatprep.subr.bf16.mxu0 0
    %562 = vmatpush1.bf16.msra.mxu0 0
    %563 = vmatprep.subr.bf16.mxu0 0
    %564 = vmatpush1.bf16.msra.mxu0 0
    %565 = vmatprep.subr.bf16.mxu0 0
    %566 = vmatpush1.bf16.msra.mxu0 0
    %567 = vmatprep.subr.bf16.mxu0 0
    %568 = vmatpush1.bf16.msra.mxu0 0
    %569 = vmatprep.subr.bf16.mxu0 0
    %570 = vmatpush1.bf16.msra.mxu0 0
    %571 = vmatprep.subr.bf16.mxu0 0
    %572 = vmatpush1.bf16.msra.mxu0 0
    %573 = vmatprep.subr.bf16.mxu0 0
    %574 = vmatpush1.bf16.msra.mxu0 0
    %575 = vmatprep.subr.bf16.mxu0 0
    %576 = vmatpush1.bf16.msra.mxu0 0
    %577 = vmatprep.mubr.bf16.mxu0 0
    %578 = vmatmul.mubr.bf16.gmra.mrb[0].mxu0 %v470
    %v579 = vpop.f32.mrb[0].mxu0
    %v580 = vadd.f32 %v495, %v579
    %v581 = vpop.f32.mrb[0].mxu0
    %v582 = vpop.f32.mrb[0].mxu0
    %v583 = vadd.f32 %v495, %v582
    %v584 = vpop.f32.mrb[0].mxu0
    %585 = vmatprep.mubr.bf16.mxu0 0
    %586 = vmatmul.mubr.bf16.gmra.mrb[0].mxu0 %v471
    %v587 = vpop.f32.mrb[0].mxu0
    %v588 = vadd.f32 %v495, %v587
    %v589 = vpop.f32.mrb[0].mxu0
    %v590 = vpop.f32.mrb[0].mxu0
    %v591 = vadd.f32 %v495, %v590
    %v592 = vpop.f32.mrb[0].mxu0
    %593 = vmatprep.mubr.bf16.mxu0 0
    %594 = vmatmul.mubr.bf16.gmra.mrb[0].mxu0 %v472
    %v595 = vpop.f32.mrb[0].mxu0
    %v596 = vadd.f32 %v495, %v595
    %v597 = vpop.f32.mrb[0].mxu0
    %v598 = vpop.f32.mrb[0].mxu0
    %v599 = vadd.f32 %v495, %v598
    %v600 = vpop.f32.mrb[0].mxu0
    %601 = vmatprep.mubr.bf16.mxu0 0
    %602 = vmatmul.mubr.bf16.gmra.mrb[0].mxu0 %v473
    %v603 = vpop.f32.mrb[0].mxu0
    %v604 = vadd.f32 %v495, %v603
    %v605 = vpop.f32.mrb[0].mxu0
    %v606 = vpop.f32.mrb[0].mxu0
    %v607 = vadd.f32 %v495, %v606
    %v608 = vpop.f32.mrb[0].mxu0
    %609 = vdwg.mxu0
    %610 = vst [vmem:[%s9] sm:$0xff] %v580
    %611 = vst [vmem:[%s9 + $0x8] sm:$0xff] %v583
    %612 = vst [vmem:[%s9 + $0x10] sm:$0xff] %v588
    %613 = vst [vmem:[%s9 + $0x18] sm:$0xff] %v591
    %614 = vst [vmem:[%s9 + $0x20] sm:$0xff] %v596
    %615 = vst [vmem:[%s9 + $0x28] sm:$0xff] %v599
    %616 = vst [vmem:[%s9 + $0x30] sm:$0xff] %v604
    %617 = vst [vmem:[%s9 + $0x38] sm:$0xff] %v607
    // Predicated region
    $region46: #{mlp_forward.1} parent=1 // pred_check
      _
    $region47: #{mlp_forward.1} parent=1 // pred_check_branch
      %619 = sbr.rel (0) target = $region49
    $region48: #{mlp_forward.1} parent=1 // pred_region
      _
    $region49: #{mlp_forward.1} parent=1 // pred_fallthru
      _
    // Predicated region
    $region50: #{mlp_forward.1} parent=1 // pred_check
      _
    $region51: #{mlp_forward.1} parent=1 // pred_check_branch
      %621 = sbr.rel (0) target = $region53
    $region52: #{mlp_forward.1} parent=1 // pred_region
      _
    $region53: #{mlp_forward.1} parent=1 // pred_fallthru
      _
    %622 = vsyncpa [#allocation3], 1
    %623 = vsyncpa [#allocation5], 1

</llo_original>
